<compile_context>
chip_gen: v6e
topology: v6e:2x2x1
jax: 0.10.0
libtpu: 0.0.40
codegen_flags: <defaults>
</compile_context>

<pallas_src>
import jax
import jax.numpy as jnp
from jax.experimental import pallas as pl
from jax.experimental.pallas import tpu as pltpu

# ---- small test-scale hyper-parameters (d_model=32, n_heads=4 -> d_k=d_v=8) ----
BS = 2
N_HEADS = 4
Q_LEN = 8
SEQ = 8
D_K = 8
D_V = 8
# self.scale is an nn.Parameter with requires_grad=lsa; lsa=False -> constant.
SCALE = float(D_K ** (-0.5))


def sdpa_kernel(q_ref, k_ref, v_ref, out_ref, attn_ref):
    # q_ref: [BH, Q_LEN, D_K], k_ref: [BH, D_K, SEQ], v_ref: [BH, SEQ, D_V]
    # where BH = bs * n_heads (flattened in the wrapper).
    q = q_ref[...]
    k = k_ref[...]
    v = v_ref[...]

    # attn_scores = matmul(q, k) * scale  -> [BH, Q_LEN, SEQ]
    scores = jnp.einsum(
        "bqd,bds->bqs", q, k, preferred_element_type=jnp.float32) * SCALE

    # TODO(synk): prev (residual attention), attn_mask, key_padding_mask and
    # nonzero attn_dropout are not implemented (all None / 0.0 in this config).

    # softmax over the last axis (numerically stable)
    m = jnp.max(scores, axis=-1, keepdims=True)
    e = jnp.exp(scores - m)
    denom = jnp.sum(e, axis=-1, keepdims=True)
    attn = e * pl.reciprocal(denom)  # exact reciprocal; keeps 1e-5 tolerance

    # output = matmul(attn, v) -> [BH, Q_LEN, D_V]
    out = jnp.einsum(
        "bqs,bsv->bqv", attn.astype(v.dtype), v,
        preferred_element_type=jnp.float32)

    # Single full-block stores (one writeback DMA per output).
    attn_ref[...] = attn.astype(attn_ref.dtype)
    out_ref[...] = out.astype(out_ref.dtype)


def scaled_dot_product_attention(q, k, v):
    """q: [bs, h, q_len, d_k], k: [bs, h, d_k, seq], v: [bs, h, seq, d_v]."""
    bs, h, qlen, dk = q.shape
    slen = k.shape[-1]
    dv = v.shape[-1]
    bh = bs * h

    # Flatten (bs, n_heads) -> one batch axis; leading-axis merge is layout-free.
    q2 = q.reshape(bh, qlen, dk)
    k2 = k.reshape(bh, dk, slen)
    v2 = v.reshape(bh, slen, dv)

    out2, attn2 = pl.pallas_call(
        sdpa_kernel,
        out_shape=(
            jax.ShapeDtypeStruct((bh, qlen, dv), jnp.float32),
            jax.ShapeDtypeStruct((bh, qlen, slen), jnp.float32),
        ),
        # Single invocation (no grid): whole arrays resident in VMEM.
        in_specs=[pl.BlockSpec(memory_space=pltpu.MemorySpace.VMEM)] * 3,
        out_specs=(
            pl.BlockSpec(memory_space=pltpu.MemorySpace.VMEM),
            pl.BlockSpec(memory_space=pltpu.MemorySpace.VMEM),
        ),
    )(q2, k2, v2)

    # Un-flatten back to the module's output shapes in the wrapper.
    return (out2.reshape(bs, h, qlen, dv),
            attn2.reshape(bs, h, qlen, slen))


def reference_sdpa(q, k, v):
    """Pure-JAX reference reproducing the torch forward (defaults)."""
    scores = jnp.einsum("bhqd,bhds->bhqs", q, k) * SCALE
    attn = jax.nn.softmax(scores, axis=-1)
    out = jnp.einsum("bhqs,bhsv->bhqv", attn, v)
    return out, attn


if __name__ == "__main__":
    key = jax.random.PRNGKey(0)
    kq, kk, kv = jax.random.split(key, 3)
    q = jax.random.normal(kq, (BS, N_HEADS, Q_LEN, D_K), jnp.float32)
    k = jax.random.normal(kk, (BS, N_HEADS, D_K, SEQ), jnp.float32)
    v = jax.random.normal(kv, (BS, N_HEADS, SEQ, D_V), jnp.float32)

    out, attn = scaled_dot_product_attention(q, k, v)
    jax.block_until_ready((out, attn))

    out_ref, attn_ref = reference_sdpa(q, k, v)
    assert jnp.allclose(out, out_ref, rtol=1e-5, atol=1e-5)
    assert jnp.allclose(attn, attn_ref, rtol=1e-5, atol=1e-5)

    print("KERNEL_OK")
</pallas_src>

<mosaic_0001>
module attributes {stable_mosaic.version = 11 : i64} {
  func.func @sdpa_kernel(%arg0: memref<8x8x8xf32, #tpu.memory_space<vmem>>, %arg1: memref<8x8x8xf32, #tpu.memory_space<vmem>>, %arg2: memref<8x8x8xf32, #tpu.memory_space<vmem>>, %arg3: memref<8x8x8xf32, #tpu.memory_space<vmem>>, %arg4: memref<8x8x8xf32, #tpu.memory_space<vmem>>) attributes {dimension_semantics = [], scalar_prefetch = 0 : i64, scratch_operands = 0 : i64, tpu.core_type = #tpu.core_type<tc>} {
    %c0 = arith.constant 0 : index
    %c0_0 = arith.constant 0 : index
    %c0_1 = arith.constant 0 : index
    %0 = vector.load %arg0[%c0, %c0_0, %c0_1] : memref<8x8x8xf32, #tpu.memory_space<vmem>>, vector<8x8x8xf32>
    %c0_2 = arith.constant 0 : index
    %c0_3 = arith.constant 0 : index
    %c0_4 = arith.constant 0 : index
    %1 = vector.load %arg1[%c0_2, %c0_3, %c0_4] : memref<8x8x8xf32, #tpu.memory_space<vmem>>, vector<8x8x8xf32>
    %c0_5 = arith.constant 0 : index
    %c0_6 = arith.constant 0 : index
    %c0_7 = arith.constant 0 : index
    %2 = vector.load %arg2[%c0_5, %c0_6, %c0_7] : memref<8x8x8xf32, #tpu.memory_space<vmem>>, vector<8x8x8xf32>
    "tpu.trace_start"() <{level = 10 : i32, message = "bqd,bds->bqs"}> : () -> ()
    %cst = arith.constant dense<0.000000e+00> : vector<8x8x8xf32>
    %3 = tpu.matmul %0, %1, %cst {dimension_numbers = #tpu.dot_dimension_numbers<[2], [1], [1], [2], [0, 0, 0, 1, 1, 2], [0], [0]>} : vector<8x8x8xf32>, vector<8x8x8xf32>, vector<8x8x8xf32> -> vector<8x8x8xf32>
    "tpu.trace_stop"() : () -> ()
    %cst_8 = arith.constant 0.353553385 : f32
    %4 = vector.broadcast %cst_8 : f32 to vector<8x8x8xf32>
    %5 = arith.mulf %3, %4 : vector<8x8x8xf32>
    %cst_9 = arith.constant dense<0xFF800000> : vector<8x8xf32>
    %6 = vector.multi_reduction <maximumf>, %5, %cst_9 [2] : vector<8x8x8xf32> to vector<8x8xf32>
    %7 = vector.shape_cast %6 : vector<8x8xf32> to vector<8x8x1xf32>
    %8 = vector.broadcast %7 : vector<8x8x1xf32> to vector<8x8x8xf32>
    %9 = arith.subf %5, %8 : vector<8x8x8xf32>
    %10 = math.exp %9 : vector<8x8x8xf32>
    %cst_10 = arith.constant dense<0.000000e+00> : vector<8x8xf32>
    %11 = vector.multi_reduction <add>, %10, %cst_10 [2] : vector<8x8x8xf32> to vector<8x8xf32>
    %12 = vector.shape_cast %11 : vector<8x8xf32> to vector<8x8x1xf32>
    %13 = tpu.reciprocal %12 : vector<8x8x1xf32> -> vector<8x8x1xf32>
    %14 = vector.broadcast %13 : vector<8x8x1xf32> to vector<8x8x8xf32>
    %15 = arith.mulf %10, %14 : vector<8x8x8xf32>
    "tpu.trace_start"() <{level = 10 : i32, message = "bqs,bsv->bqv"}> : () -> ()
    %cst_11 = arith.constant dense<0.000000e+00> : vector<8x8x8xf32>
    %16 = tpu.matmul %15, %2, %cst_11 {dimension_numbers = #tpu.dot_dimension_numbers<[2], [1], [1], [2], [0, 0, 0, 1, 1, 2], [0], [0]>} : vector<8x8x8xf32>, vector<8x8x8xf32>, vector<8x8x8xf32> -> vector<8x8x8xf32>
    "tpu.trace_stop"() : () -> ()
    %c0_12 = arith.constant 0 : index
    %c0_13 = arith.constant 0 : index
    %c0_14 = arith.constant 0 : index
    %17 = vector.load %arg4[%c0_12, %c0_13, %c0_14] : memref<8x8x8xf32, #tpu.memory_space<vmem>>, vector<8x8x8xf32>
    tpu.vector_store %arg4[%c0_12, %c0_13, %c0_14], %15 {strides = array<i32>} : memref<8x8x8xf32, #tpu.memory_space<vmem>>, vector<8x8x8xf32>,
    %c0_15 = arith.constant 0 : index
    %c0_16 = arith.constant 0 : index
    %c0_17 = arith.constant 0 : index
    %18 = vector.load %arg3[%c0_15, %c0_16, %c0_17] : memref<8x8x8xf32, #tpu.memory_space<vmem>>, vector<8x8x8xf32>
    tpu.vector_store %arg3[%c0_15, %c0_16, %c0_17], %16 {strides = array<i32>} : memref<8x8x8xf32, #tpu.memory_space<vmem>>, vector<8x8x8xf32>,
    return
  }
}

</mosaic_0001>

<llo_original>
// kernel: tpu_custom_call.1
$region0: #{tpu_custom_call.1}
  #allocation0 [shape = 'u32[]', space=smem, size = 0x4, offset = 0x4, fixed_abs, tag = 'smem constant byte address 0x4 - core index']
  #allocation1 [shape = 'u32[144,128]{1,0:T(1,128)}', space=vmem, size = 0x12000, scoped, tag = 'internal scratch']
  %s0 = inlined_call_operand.hbm [shape: f32[8,8,8], index: 0, kind: input, shape index: {}]
  %s1 = inlined_call_operand.hbm [shape: f32[8,8,8], index: 1, kind: input, shape index: {}]
  %s2 = inlined_call_operand.hbm [shape: f32[8,8,8], index: 2, kind: input, shape index: {}]
  %s3 = inlined_call_operand.hbm [shape: f32[8,8,8], index: 3, kind: output, shape index: {0}]
  %s4 = inlined_call_operand.hbm [shape: f32[8,8,8], index: 4, kind: output, shape index: {1}]
  %5 = xla_tuple %s3, %s4
  %s6 = sld [smem:[#allocation0]]
  $region42: #{tpu_custom_call.1} parent=0
    _
  %s8 = ssub.s32 1, %s6
  %s9 = scalar_select 0, %s8, %s6
  $region1: #{tpu_custom_call.1} parent=0
    #allocation2 [shape = 'u8[32768]{0}', space=vmem, size = 0x8000, scoped, tag = 'input window, operand 0, single buffered']
    #allocation3 [shape = 's32[1]{0}', space=sflag, size = 0x4, scoped, tag = 'scoped memory for tpu_custom_call.1']
    #allocation4 [shape = 's32[1]{0}', space=sflag, size = 0x4, scoped, tag = 'scoped memory for tpu_custom_call.1']
    #allocation5 [shape = 'u8[32768]{0}', space=vmem, size = 0x8000, scoped, tag = 'input window, operand 1, single buffered']
    #allocation6 [shape = 's32[1]{0}', space=sflag, size = 0x4, scoped, tag = 'scoped memory for tpu_custom_call.1']
    #allocation7 [shape = 'u8[32768]{0}', space=vmem, size = 0x8000, scoped, tag = 'input window, operand 2, single buffered']
    #allocation8 [shape = 'u8[32768]{0}', space=vmem, size = 0x8000, scoped, tag = 'output window, operand 0, single buffered']
    #allocation9 [shape = 'u8[32768]{0}', space=vmem, size = 0x8000, scoped, tag = 'output window, operand 1, single buffered']
    #allocation10 [shape = 's32[1]{0}', space=sflag, size = 0x4, scoped, tag = 'scoped memory for tpu_custom_call.1']
    %10 = vsyncpa [#allocation3], 0
    %11 = vsyncpa [#allocation6], 0
    %12 = vsyncpa [#allocation4], 0
    %13 = vsyncpa [#allocation10], 0
    // Predicated region
    $region2: #{tpu_custom_call.1} parent=1 // pred_check
      _
    $region3: #{tpu_custom_call.1} parent=1 // pred_check_branch
      %15 = sbr.rel (0) target = $region5
    $region4: #{tpu_custom_call.1} parent=1 // pred_region
      %s17 = ssub.s32 1024, 1024
      %18 = vsyncadd [#allocation3], %s17
      %s19 = sshll.u32 [#allocation2], 4
      %s20 = int_to_ptr.vmem [resolvable:$true] %s19
      %25 = dma.hbm_to_vmem [thread:$0]  %s0, 1024, %s20, [#allocation3], 128, 128, 8
    $region5: #{tpu_custom_call.1} parent=1 // pred_fallthru
      _
    // Predicated region
    $region6: #{tpu_custom_call.1} parent=1 // pred_check
      _
    $region7: #{tpu_custom_call.1} parent=1 // pred_check_branch
      %27 = sbr.rel (0) target = $region9
    $region8: #{tpu_custom_call.1} parent=1 // pred_region
      %s29 = ssub.s32 1024, 1024
      %30 = vsyncadd [#allocation6], %s29
      %s31 = sshll.u32 [#allocation5], 4
      %s32 = int_to_ptr.vmem [resolvable:$true] %s31
      %37 = dma.hbm_to_vmem [thread:$0]  %s1, 1024, %s32, [#allocation6], 128, 128, 8
    $region9: #{tpu_custom_call.1} parent=1 // pred_fallthru
      _
    // Predicated region
    $region10: #{tpu_custom_call.1} parent=1 // pred_check
      _
    $region11: #{tpu_custom_call.1} parent=1 // pred_check_branch
      %39 = sbr.rel (0) target = $region13
    $region12: #{tpu_custom_call.1} parent=1 // pred_region
      %s41 = ssub.s32 1024, 1024
      %42 = vsyncadd [#allocation6], %s41
      %s43 = sshll.u32 [#allocation7], 4
      %s44 = int_to_ptr.vmem [resolvable:$true] %s43
      %49 = dma.hbm_to_vmem [thread:$0]  %s2, 1024, %s44, [#allocation6], 128, 128, 8
    $region13: #{tpu_custom_call.1} parent=1 // pred_fallthru
      _
    // Predicated region
    $region14: #{tpu_custom_call.1} parent=1 // pred_check
      _
    $region15: #{tpu_custom_call.1} parent=1 // pred_check_branch
      %51 = sbr.rel (0) target = $region17
    $region16: #{tpu_custom_call.1} parent=1 // pred_region
      %52 = dma.done [#allocation3], 1024
    $region17: #{tpu_custom_call.1} parent=1 // pred_fallthru
      _
    // Predicated region
    $region18: #{tpu_custom_call.1} parent=1 // pred_check
      _
    $region19: #{tpu_custom_call.1} parent=1 // pred_check_branch
      %54 = sbr.rel (0) target = $region21
    $region20: #{tpu_custom_call.1} parent=1 // pred_region
      %55 = dma.done [#allocation6], 1024
    $region21: #{tpu_custom_call.1} parent=1 // pred_fallthru
      _
    // Predicated region
    $region22: #{tpu_custom_call.1} parent=1 // pred_check
      _
    $region23: #{tpu_custom_call.1} parent=1 // pred_check_branch
      %57 = sbr.rel (0) target = $region25
    $region24: #{tpu_custom_call.1} parent=1 // pred_region
      %58 = dma.done [#allocation6], 1024
    $region25: #{tpu_custom_call.1} parent=1 // pred_fallthru
      _
    %v59 = vld [vmem:[#allocation2] sm:$0xff]
    %v60 = vld [vmem:[#allocation2 + $0x8] sm:$0xff]
    %v61 = vld [vmem:[#allocation2 + $0x10] sm:$0xff]
    %v62 = vld [vmem:[#allocation2 + $0x18] sm:$0xff]
    %v63 = vld [vmem:[#allocation2 + $0x20] sm:$0xff]
    %v64 = vld [vmem:[#allocation2 + $0x28] sm:$0xff]
    %v65 = vld [vmem:[#allocation2 + $0x30] sm:$0xff]
    %v66 = vld [vmem:[#allocation2 + $0x38] sm:$0xff]
    %v67 = vld [vmem:[#allocation5] sm:$0xff]
    %v68 = vld [vmem:[#allocation5 + $0x8] sm:$0xff]
    %v69 = vld [vmem:[#allocation5 + $0x10] sm:$0xff]
    %v70 = vld [vmem:[#allocation5 + $0x18] sm:$0xff]
    %v71 = vld [vmem:[#allocation5 + $0x20] sm:$0xff]
    %v72 = vld [vmem:[#allocation5 + $0x28] sm:$0xff]
    %v73 = vld [vmem:[#allocation5 + $0x30] sm:$0xff]
    %v74 = vld [vmem:[#allocation5 + $0x38] sm:$0xff]
    %v75 = vld [vmem:[#allocation7] sm:$0xff]
    %v76 = vld [vmem:[#allocation7 + $0x8] sm:$0xff]
    %v77 = vld [vmem:[#allocation7 + $0x10] sm:$0xff]
    %v78 = vld [vmem:[#allocation7 + $0x18] sm:$0xff]
    %v79 = vld [vmem:[#allocation7 + $0x20] sm:$0xff]
    %v80 = vld [vmem:[#allocation7 + $0x28] sm:$0xff]
    %v81 = vld [vmem:[#allocation7 + $0x30] sm:$0xff]
    %v82 = vld [vmem:[#allocation7 + $0x38] sm:$0xff]
    %vm83 = vcmask 64512
    %v85 = vsel %vm83, %v59, 0
    %87 = vmatprep.subr.mxu0 0.0
    %88 = vmatpush1.msra.mxu0 0.0
    %89 = vmatprep.subr.mxu0 0.0
    %90 = vmatpush1.msra.mxu0 0.0
    %91 = vmatprep.subr.mxu0 0.0
    %92 = vmatpush1.msra.mxu0 0.0
    %93 = vmatprep.subr.mxu0 0.0
    %94 = vmatpush1.msra.mxu0 0.0
    %95 = vmatprep.subr.mxu0 0.0
    %96 = vmatpush1.msra.mxu0 0.0
    %97 = vmatprep.subr.mxu0 0.0
    %98 = vmatpush1.msra.mxu0 0.0
    %99 = vmatprep.subr.mxu0 0.0
    %100 = vmatpush1.msra.mxu0 0.0
    %101 = vmatprep.subr.mxu0 0.0
    %102 = vmatpush1.msra.mxu0 0.0
    %103 = vmatprep.subr.mxu0 0.0
    %104 = vmatpush1.msra.mxu0 0.0
    %105 = vmatprep.subr.mxu0 0.0
    %106 = vmatpush1.msra.mxu0 0.0
    %107 = vmatprep.subr.mxu0 0.0
    %108 = vmatpush1.msra.mxu0 0.0
    %109 = vmatprep.subr.mxu0 0.0
    %110 = vmatpush1.msra.mxu0 0.0
    %111 = vmatprep.subr.mxu0 0.0
    %112 = vmatpush1.msra.mxu0 0.0
    %113 = vmatprep.subr.mxu0 0.0
    %114 = vmatpush1.msra.mxu0 0.0
    %115 = vmatprep.subr.mxu0 0.0
    %116 = vmatpush1.msra.mxu0 0.0
    %117 = vmatprep.subr.mxu0 0.0
    %118 = vmatpush1.msra.mxu0 %v67
    %119 = vmatprep.subr.mxu0 0.0
    %120 = vmatpush2.msra.mxu0 0.0
    %121 = vmatprep.subr.mxu0 0.0
    %122 = vmatpush2.msra.mxu0 0.0
    %123 = vmatprep.subr.mxu0 0.0
    %124 = vmatpush2.msra.mxu0 0.0
    %125 = vmatprep.subr.mxu0 0.0
    %126 = vmatpush2.msra.mxu0 0.0
    %127 = vmatprep.subr.mxu0 0.0
    %128 = vmatpush2.msra.mxu0 0.0
    %129 = vmatprep.subr.mxu0 0.0
    %130 = vmatpush2.msra.mxu0 0.0
    %131 = vmatprep.subr.mxu0 0.0
    %132 = vmatpush2.msra.mxu0 0.0
    %133 = vmatprep.subr.mxu0 0.0
    %134 = vmatpush2.msra.mxu0 0.0
    %135 = vmatprep.subr.mxu0 0.0
    %136 = vmatpush2.msra.mxu0 0.0
    %137 = vmatprep.subr.mxu0 0.0
    %138 = vmatpush2.msra.mxu0 0.0
    %139 = vmatprep.subr.mxu0 0.0
    %140 = vmatpush2.msra.mxu0 0.0
    %141 = vmatprep.subr.mxu0 0.0
    %142 = vmatpush2.msra.mxu0 0.0
    %143 = vmatprep.subr.mxu0 0.0
    %144 = vmatpush2.msra.mxu0 0.0
    %145 = vmatprep.subr.mxu0 0.0
    %146 = vmatpush2.msra.mxu0 0.0
    %147 = vmatprep.subr.mxu0 0.0
    %148 = vmatpush2.msra.mxu0 0.0
    %149 = vmatprep.subr.mxu0 0.0
    %150 = vmatpush2.msra.mxu0 0.0
    %151 = vmatprep.mubr.f32.mxu0 0.0
    %152 = vmatmul.mubr.f32.gmra.mxu0 %v85
    %v153 = vpop.f32.mrf.mxu0
    %v154 = vadd.f32 0.0, %v153
    %v155 = vpop.f32.mrf.mxu0
    %156 = vdwg.mxu0
    %v158 = vsel %vm83, %v60, 0
    %160 = vmatprep.subr.mxu0 0.0
    %161 = vmatpush1.msra.mxu0 0.0
    %162 = vmatprep.subr.mxu0 0.0
    %163 = vmatpush1.msra.mxu0 0.0
    %164 = vmatprep.subr.mxu0 0.0
    %165 = vmatpush1.msra.mxu0 0.0
    %166 = vmatprep.subr.mxu0 0.0
    %167 = vmatpush1.msra.mxu0 0.0
    %168 = vmatprep.subr.mxu0 0.0
    %169 = vmatpush1.msra.mxu0 0.0
    %170 = vmatprep.subr.mxu0 0.0
    %171 = vmatpush1.msra.mxu0 0.0
    %172 = vmatprep.subr.mxu0 0.0
    %173 = vmatpush1.msra.mxu0 0.0
    %174 = vmatprep.subr.mxu0 0.0
    %175 = vmatpush1.msra.mxu0 0.0
    %176 = vmatprep.subr.mxu0 0.0
    %177 = vmatpush1.msra.mxu0 0.0
    %178 = vmatprep.subr.mxu0 0.0
    %179 = vmatpush1.msra.mxu0 0.0
    %180 = vmatprep.subr.mxu0 0.0
    %181 = vmatpush1.msra.mxu0 0.0
    %182 = vmatprep.subr.mxu0 0.0
    %183 = vmatpush1.msra.mxu0 0.0
    %184 = vmatprep.subr.mxu0 0.0
    %185 = vmatpush1.msra.mxu0 0.0
    %186 = vmatprep.subr.mxu0 0.0
    %187 = vmatpush1.msra.mxu0 0.0
    %188 = vmatprep.subr.mxu0 0.0
    %189 = vmatpush1.msra.mxu0 0.0
    %190 = vmatprep.subr.mxu0 0.0
    %191 = vmatpush1.msra.mxu0 %v68
    %192 = vmatprep.subr.mxu0 0.0
    %193 = vmatpush2.msra.mxu0 0.0
    %194 = vmatprep.subr.mxu0 0.0
    %195 = vmatpush2.msra.mxu0 0.0
    %196 = vmatprep.subr.mxu0 0.0
    %197 = vmatpush2.msra.mxu0 0.0
    %198 = vmatprep.subr.mxu0 0.0
    %199 = vmatpush2.msra.mxu0 0.0
    %200 = vmatprep.subr.mxu0 0.0
    %201 = vmatpush2.msra.mxu0 0.0
    %202 = vmatprep.subr.mxu0 0.0
    %203 = vmatpush2.msra.mxu0 0.0
    %204 = vmatprep.subr.mxu0 0.0
    %205 = vmatpush2.msra.mxu0 0.0
    %206 = vmatprep.subr.mxu0 0.0
    %207 = vmatpush2.msra.mxu0 0.0
    %208 = vmatprep.subr.mxu0 0.0
    %209 = vmatpush2.msra.mxu0 0.0
    %210 = vmatprep.subr.mxu0 0.0
    %211 = vmatpush2.msra.mxu0 0.0
    %212 = vmatprep.subr.mxu0 0.0
    %213 = vmatpush2.msra.mxu0 0.0
    %214 = vmatprep.subr.mxu0 0.0
    %215 = vmatpush2.msra.mxu0 0.0
    %216 = vmatprep.subr.mxu0 0.0
    %217 = vmatpush2.msra.mxu0 0.0
    %218 = vmatprep.subr.mxu0 0.0
    %219 = vmatpush2.msra.mxu0 0.0
    %220 = vmatprep.subr.mxu0 0.0
    %221 = vmatpush2.msra.mxu0 0.0
    %222 = vmatprep.subr.mxu0 0.0
    %223 = vmatpush2.msra.mxu0 0.0
    %224 = vmatprep.mubr.f32.mxu0 0.0
    %225 = vmatmul.mubr.f32.gmra.mxu0 %v158
    %v226 = vpop.f32.mrf.mxu0
    %v227 = vadd.f32 0.0, %v226
    %v228 = vpop.f32.mrf.mxu0
    %229 = vdwg.mxu0
    %v231 = vsel %vm83, %v61, 0
    %233 = vmatprep.subr.mxu0 0.0
    %234 = vmatpush1.msra.mxu0 0.0
    %235 = vmatprep.subr.mxu0 0.0
    %236 = vmatpush1.msra.mxu0 0.0
    %237 = vmatprep.subr.mxu0 0.0
    %238 = vmatpush1.msra.mxu0 0.0
    %239 = vmatprep.subr.mxu0 0.0
    %240 = vmatpush1.msra.mxu0 0.0
    %241 = vmatprep.subr.mxu0 0.0
    %242 = vmatpush1.msra.mxu0 0.0
    %243 = vmatprep.subr.mxu0 0.0
    %244 = vmatpush1.msra.mxu0 0.0
    %245 = vmatprep.subr.mxu0 0.0
    %246 = vmatpush1.msra.mxu0 0.0
    %247 = vmatprep.subr.mxu0 0.0
    %248 = vmatpush1.msra.mxu0 0.0
    %249 = vmatprep.subr.mxu0 0.0
    %250 = vmatpush1.msra.mxu0 0.0
    %251 = vmatprep.subr.mxu0 0.0
    %252 = vmatpush1.msra.mxu0 0.0
    %253 = vmatprep.subr.mxu0 0.0
    %254 = vmatpush1.msra.mxu0 0.0
    %255 = vmatprep.subr.mxu0 0.0
    %256 = vmatpush1.msra.mxu0 0.0
    %257 = vmatprep.subr.mxu0 0.0
    %258 = vmatpush1.msra.mxu0 0.0
    %259 = vmatprep.subr.mxu0 0.0
    %260 = vmatpush1.msra.mxu0 0.0
    %261 = vmatprep.subr.mxu0 0.0
    %262 = vmatpush1.msra.mxu0 0.0
    %263 = vmatprep.subr.mxu0 0.0
    %264 = vmatpush1.msra.mxu0 %v69
    %265 = vmatprep.subr.mxu0 0.0
    %266 = vmatpush2.msra.mxu0 0.0
    %267 = vmatprep.subr.mxu0 0.0
    %268 = vmatpush2.msra.mxu0 0.0
    %269 = vmatprep.subr.mxu0 0.0
    %270 = vmatpush2.msra.mxu0 0.0
    %271 = vmatprep.subr.mxu0 0.0
    %272 = vmatpush2.msra.mxu0 0.0
    %273 = vmatprep.subr.mxu0 0.0
    %274 = vmatpush2.msra.mxu0 0.0
    %275 = vmatprep.subr.mxu0 0.0
    %276 = vmatpush2.msra.mxu0 0.0
    %277 = vmatprep.subr.mxu0 0.0
    %278 = vmatpush2.msra.mxu0 0.0
    %279 = vmatprep.subr.mxu0 0.0
    %280 = vmatpush2.msra.mxu0 0.0
    %281 = vmatprep.subr.mxu0 0.0
    %282 = vmatpush2.msra.mxu0 0.0
    %283 = vmatprep.subr.mxu0 0.0
    %284 = vmatpush2.msra.mxu0 0.0
    %285 = vmatprep.subr.mxu0 0.0
    %286 = vmatpush2.msra.mxu0 0.0
    %287 = vmatprep.subr.mxu0 0.0
    %288 = vmatpush2.msra.mxu0 0.0
    %289 = vmatprep.subr.mxu0 0.0
    %290 = vmatpush2.msra.mxu0 0.0
    %291 = vmatprep.subr.mxu0 0.0
    %292 = vmatpush2.msra.mxu0 0.0
    %293 = vmatprep.subr.mxu0 0.0
    %294 = vmatpush2.msra.mxu0 0.0
    %295 = vmatprep.subr.mxu0 0.0
    %296 = vmatpush2.msra.mxu0 0.0
    %297 = vmatprep.mubr.f32.mxu0 0.0
    %298 = vmatmul.mubr.f32.gmra.mxu0 %v231
    %v299 = vpop.f32.mrf.mxu0
    %v300 = vadd.f32 0.0, %v299
    %v301 = vpop.f32.mrf.mxu0
    %302 = vdwg.mxu0
    %v304 = vsel %vm83, %v62, 0
    %306 = vmatprep.subr.mxu0 0.0
    %307 = vmatpush1.msra.mxu0 0.0
    %308 = vmatprep.subr.mxu0 0.0
    %309 = vmatpush1.msra.mxu0 0.0
    %310 = vmatprep.subr.mxu0 0.0
    %311 = vmatpush1.msra.mxu0 0.0
    %312 = vmatprep.subr.mxu0 0.0
    %313 = vmatpush1.msra.mxu0 0.0
    %314 = vmatprep.subr.mxu0 0.0
    %315 = vmatpush1.msra.mxu0 0.0
    %316 = vmatprep.subr.mxu0 0.0
    %317 = vmatpush1.msra.mxu0 0.0
    %318 = vmatprep.subr.mxu0 0.0
    %319 = vmatpush1.msra.mxu0 0.0
    %320 = vmatprep.subr.mxu0 0.0
    %321 = vmatpush1.msra.mxu0 0.0
    %322 = vmatprep.subr.mxu0 0.0
    %323 = vmatpush1.msra.mxu0 0.0
    %324 = vmatprep.subr.mxu0 0.0
    %325 = vmatpush1.msra.mxu0 0.0
    %326 = vmatprep.subr.mxu0 0.0
    %327 = vmatpush1.msra.mxu0 0.0
    %328 = vmatprep.subr.mxu0 0.0
    %329 = vmatpush1.msra.mxu0 0.0
    %330 = vmatprep.subr.mxu0 0.0
    %331 = vmatpush1.msra.mxu0 0.0
    %332 = vmatprep.subr.mxu0 0.0
    %333 = vmatpush1.msra.mxu0 0.0
    %334 = vmatprep.subr.mxu0 0.0
    %335 = vmatpush1.msra.mxu0 0.0
    %336 = vmatprep.subr.mxu0 0.0
    %337 = vmatpush1.msra.mxu0 %v70
    %338 = vmatprep.subr.mxu0 0.0
    %339 = vmatpush2.msra.mxu0 0.0
    %340 = vmatprep.subr.mxu0 0.0
    %341 = vmatpush2.msra.mxu0 0.0
    %342 = vmatprep.subr.mxu0 0.0
    %343 = vmatpush2.msra.mxu0 0.0
    %344 = vmatprep.subr.mxu0 0.0
    %345 = vmatpush2.msra.mxu0 0.0
    %346 = vmatprep.subr.mxu0 0.0
    %347 = vmatpush2.msra.mxu0 0.0
    %348 = vmatprep.subr.mxu0 0.0
    %349 = vmatpush2.msra.mxu0 0.0
    %350 = vmatprep.subr.mxu0 0.0
    %351 = vmatpush2.msra.mxu0 0.0
    %352 = vmatprep.subr.mxu0 0.0
    %353 = vmatpush2.msra.mxu0 0.0
    %354 = vmatprep.subr.mxu0 0.0
    %355 = vmatpush2.msra.mxu0 0.0
    %356 = vmatprep.subr.mxu0 0.0
    %357 = vmatpush2.msra.mxu0 0.0
    %358 = vmatprep.subr.mxu0 0.0
    %359 = vmatpush2.msra.mxu0 0.0
    %360 = vmatprep.subr.mxu0 0.0
    %361 = vmatpush2.msra.mxu0 0.0
    %362 = vmatprep.subr.mxu0 0.0
    %363 = vmatpush2.msra.mxu0 0.0
    %364 = vmatprep.subr.mxu0 0.0
    %365 = vmatpush2.msra.mxu0 0.0
    %366 = vmatprep.subr.mxu0 0.0
    %367 = vmatpush2.msra.mxu0 0.0
    %368 = vmatprep.subr.mxu0 0.0
    %369 = vmatpush2.msra.mxu0 0.0
    %370 = vmatprep.mubr.f32.mxu0 0.0
    %371 = vmatmul.mubr.f32.gmra.mxu0 %v304
    %v372 = vpop.f32.mrf.mxu0
    %v373 = vadd.f32 0.0, %v372
    %v374 = vpop.f32.mrf.mxu0
    %375 = vdwg.mxu0
    %v377 = vsel %vm83, %v63, 0
    %379 = vmatprep.subr.mxu0 0.0
    %380 = vmatpush1.msra.mxu0 0.0
    %381 = vmatprep.subr.mxu0 0.0
    %382 = vmatpush1.msra.mxu0 0.0
    %383 = vmatprep.subr.mxu0 0.0
    %384 = vmatpush1.msra.mxu0 0.0
    %385 = vmatprep.subr.mxu0 0.0
    %386 = vmatpush1.msra.mxu0 0.0
    %387 = vmatprep.subr.mxu0 0.0
    %388 = vmatpush1.msra.mxu0 0.0
    %389 = vmatprep.subr.mxu0 0.0
    %390 = vmatpush1.msra.mxu0 0.0
    %391 = vmatprep.subr.mxu0 0.0
    %392 = vmatpush1.msra.mxu0 0.0
    %393 = vmatprep.subr.mxu0 0.0
    %394 = vmatpush1.msra.mxu0 0.0
    %395 = vmatprep.subr.mxu0 0.0
    %396 = vmatpush1.msra.mxu0 0.0
    %397 = vmatprep.subr.mxu0 0.0
    %398 = vmatpush1.msra.mxu0 0.0
    %399 = vmatprep.subr.mxu0 0.0
    %400 = vmatpush1.msra.mxu0 0.0
    %401 = vmatprep.subr.mxu0 0.0
    %402 = vmatpush1.msra.mxu0 0.0
    %403 = vmatprep.subr.mxu0 0.0
    %404 = vmatpush1.msra.mxu0 0.0
    %405 = vmatprep.subr.mxu0 0.0
    %406 = vmatpush1.msra.mxu0 0.0
    %407 = vmatprep.subr.mxu0 0.0
    %408 = vmatpush1.msra.mxu0 0.0
    %409 = vmatprep.subr.mxu0 0.0
    %410 = vmatpush1.msra.mxu0 %v71
    %411 = vmatprep.subr.mxu0 0.0
    %412 = vmatpush2.msra.mxu0 0.0
    %413 = vmatprep.subr.mxu0 0.0
    %414 = vmatpush2.msra.mxu0 0.0
    %415 = vmatprep.subr.mxu0 0.0
    %416 = vmatpush2.msra.mxu0 0.0
    %417 = vmatprep.subr.mxu0 0.0
    %418 = vmatpush2.msra.mxu0 0.0
    %419 = vmatprep.subr.mxu0 0.0
    %420 = vmatpush2.msra.mxu0 0.0
    %421 = vmatprep.subr.mxu0 0.0
    %422 = vmatpush2.msra.mxu0 0.0
    %423 = vmatprep.subr.mxu0 0.0
    %424 = vmatpush2.msra.mxu0 0.0
    %425 = vmatprep.subr.mxu0 0.0
    %426 = vmatpush2.msra.mxu0 0.0
    %427 = vmatprep.subr.mxu0 0.0
    %428 = vmatpush2.msra.mxu0 0.0
    %429 = vmatprep.subr.mxu0 0.0
    %430 = vmatpush2.msra.mxu0 0.0
    %431 = vmatprep.subr.mxu0 0.0
    %432 = vmatpush2.msra.mxu0 0.0
    %433 = vmatprep.subr.mxu0 0.0
    %434 = vmatpush2.msra.mxu0 0.0
    %435 = vmatprep.subr.mxu0 0.0
    %436 = vmatpush2.msra.mxu0 0.0
    %437 = vmatprep.subr.mxu0 0.0
    %438 = vmatpush2.msra.mxu0 0.0
    %439 = vmatprep.subr.mxu0 0.0
    %440 = vmatpush2.msra.mxu0 0.0
    %441 = vmatprep.subr.mxu0 0.0
    %442 = vmatpush2.msra.mxu0 0.0
    %443 = vmatprep.mubr.f32.mxu0 0.0
    %444 = vmatmul.mubr.f32.gmra.mxu0 %v377
    %v445 = vpop.f32.mrf.mxu0
    %v446 = vadd.f32 0.0, %v445
    %v447 = vpop.f32.mrf.mxu0
    %448 = vdwg.mxu0
    %v450 = vsel %vm83, %v64, 0
    %452 = vmatprep.subr.mxu0 0.0
    %453 = vmatpush1.msra.mxu0 0.0
    %454 = vmatprep.subr.mxu0 0.0
    %455 = vmatpush1.msra.mxu0 0.0
    %456 = vmatprep.subr.mxu0 0.0
    %457 = vmatpush1.msra.mxu0 0.0
    %458 = vmatprep.subr.mxu0 0.0
    %459 = vmatpush1.msra.mxu0 0.0
    %460 = vmatprep.subr.mxu0 0.0
    %461 = vmatpush1.msra.mxu0 0.0
    %462 = vmatprep.subr.mxu0 0.0
    %463 = vmatpush1.msra.mxu0 0.0
    %464 = vmatprep.subr.mxu0 0.0
    %465 = vmatpush1.msra.mxu0 0.0
    %466 = vmatprep.subr.mxu0 0.0
    %467 = vmatpush1.msra.mxu0 0.0
    %468 = vmatprep.subr.mxu0 0.0
    %469 = vmatpush1.msra.mxu0 0.0
    %470 = vmatprep.subr.mxu0 0.0
    %471 = vmatpush1.msra.mxu0 0.0
    %472 = vmatprep.subr.mxu0 0.0
    %473 = vmatpush1.msra.mxu0 0.0
    %474 = vmatprep.subr.mxu0 0.0
    %475 = vmatpush1.msra.mxu0 0.0
    %476 = vmatprep.subr.mxu0 0.0
    %477 = vmatpush1.msra.mxu0 0.0
    %478 = vmatprep.subr.mxu0 0.0
    %479 = vmatpush1.msra.mxu0 0.0
    %480 = vmatprep.subr.mxu0 0.0
    %481 = vmatpush1.msra.mxu0 0.0
    %482 = vmatprep.subr.mxu0 0.0
    %483 = vmatpush1.msra.mxu0 %v72
    %484 = vmatprep.subr.mxu0 0.0
    %485 = vmatpush2.msra.mxu0 0.0
    %486 = vmatprep.subr.mxu0 0.0
    %487 = vmatpush2.msra.mxu0 0.0
    %488 = vmatprep.subr.mxu0 0.0
    %489 = vmatpush2.msra.mxu0 0.0
    %490 = vmatprep.subr.mxu0 0.0
    %491 = vmatpush2.msra.mxu0 0.0
    %492 = vmatprep.subr.mxu0 0.0
    %493 = vmatpush2.msra.mxu0 0.0
    %494 = vmatprep.subr.mxu0 0.0
    %495 = vmatpush2.msra.mxu0 0.0
    %496 = vmatprep.subr.mxu0 0.0
    %497 = vmatpush2.msra.mxu0 0.0
    %498 = vmatprep.subr.mxu0 0.0
    %499 = vmatpush2.msra.mxu0 0.0
    %500 = vmatprep.subr.mxu0 0.0
    %501 = vmatpush2.msra.mxu0 0.0
    %502 = vmatprep.subr.mxu0 0.0
    %503 = vmatpush2.msra.mxu0 0.0
    %504 = vmatprep.subr.mxu0 0.0
    %505 = vmatpush2.msra.mxu0 0.0
    %506 = vmatprep.subr.mxu0 0.0
    %507 = vmatpush2.msra.mxu0 0.0
    %508 = vmatprep.subr.mxu0 0.0
    %509 = vmatpush2.msra.mxu0 0.0
    %510 = vmatprep.subr.mxu0 0.0
    %511 = vmatpush2.msra.mxu0 0.0
    %512 = vmatprep.subr.mxu0 0.0
    %513 = vmatpush2.msra.mxu0 0.0
    %514 = vmatprep.subr.mxu0 0.0
    %515 = vmatpush2.msra.mxu0 0.0
    %516 = vmatprep.mubr.f32.mxu0 0.0
    %517 = vmatmul.mubr.f32.gmra.mxu0 %v450
    %v518 = vpop.f32.mrf.mxu0
    %v519 = vadd.f32 0.0, %v518
    %v520 = vpop.f32.mrf.mxu0
    %521 = vdwg.mxu0
    %v523 = vsel %vm83, %v65, 0
    %525 = vmatprep.subr.mxu0 0.0
    %526 = vmatpush1.msra.mxu0 0.0
    %527 = vmatprep.subr.mxu0 0.0
    %528 = vmatpush1.msra.mxu0 0.0
    %529 = vmatprep.subr.mxu0 0.0
    %530 = vmatpush1.msra.mxu0 0.0
    %531 = vmatprep.subr.mxu0 0.0
    %532 = vmatpush1.msra.mxu0 0.0
    %533 = vmatprep.subr.mxu0 0.0
    %534 = vmatpush1.msra.mxu0 0.0
    %535 = vmatprep.subr.mxu0 0.0
    %536 = vmatpush1.msra.mxu0 0.0
    %537 = vmatprep.subr.mxu0 0.0
    %538 = vmatpush1.msra.mxu0 0.0
    %539 = vmatprep.subr.mxu0 0.0
    %540 = vmatpush1.msra.mxu0 0.0
    %541 = vmatprep.subr.mxu0 0.0
    %542 = vmatpush1.msra.mxu0 0.0
    %543 = vmatprep.subr.mxu0 0.0
    %544 = vmatpush1.msra.mxu0 0.0
    %545 = vmatprep.subr.mxu0 0.0
    %546 = vmatpush1.msra.mxu0 0.0
    %547 = vmatprep.subr.mxu0 0.0
    %548 = vmatpush1.msra.mxu0 0.0
    %549 = vmatprep.subr.mxu0 0.0
    %550 = vmatpush1.msra.mxu0 0.0
    %551 = vmatprep.subr.mxu0 0.0
    %552 = vmatpush1.msra.mxu0 0.0
    %553 = vmatprep.subr.mxu0 0.0
    %554 = vmatpush1.msra.mxu0 0.0
    %555 = vmatprep.subr.mxu0 0.0
    %556 = vmatpush1.msra.mxu0 %v73
    %557 = vmatprep.subr.mxu0 0.0
    %558 = vmatpush2.msra.mxu0 0.0
    %559 = vmatprep.subr.mxu0 0.0
    %560 = vmatpush2.msra.mxu0 0.0
    %561 = vmatprep.subr.mxu0 0.0
    %562 = vmatpush2.msra.mxu0 0.0
    %563 = vmatprep.subr.mxu0 0.0
    %564 = vmatpush2.msra.mxu0 0.0
    %565 = vmatprep.subr.mxu0 0.0
    %566 = vmatpush2.msra.mxu0 0.0
    %567 = vmatprep.subr.mxu0 0.0
    %568 = vmatpush2.msra.mxu0 0.0
    %569 = vmatprep.subr.mxu0 0.0
    %570 = vmatpush2.msra.mxu0 0.0
    %571 = vmatprep.subr.mxu0 0.0
    %572 = vmatpush2.msra.mxu0 0.0
    %573 = vmatprep.subr.mxu0 0.0
    %574 = vmatpush2.msra.mxu0 0.0
    %575 = vmatprep.subr.mxu0 0.0
    %576 = vmatpush2.msra.mxu0 0.0
    %577 = vmatprep.subr.mxu0 0.0
    %578 = vmatpush2.msra.mxu0 0.0
    %579 = vmatprep.subr.mxu0 0.0
    %580 = vmatpush2.msra.mxu0 0.0
    %581 = vmatprep.subr.mxu0 0.0
    %582 = vmatpush2.msra.mxu0 0.0
    %583 = vmatprep.subr.mxu0 0.0
    %584 = vmatpush2.msra.mxu0 0.0
    %585 = vmatprep.subr.mxu0 0.0
    %586 = vmatpush2.msra.mxu0 0.0
    %587 = vmatprep.subr.mxu0 0.0
    %588 = vmatpush2.msra.mxu0 0.0
    %589 = vmatprep.mubr.f32.mxu0 0.0
    %590 = vmatmul.mubr.f32.gmra.mxu0 %v523
    %v591 = vpop.f32.mrf.mxu0
    %v592 = vadd.f32 0.0, %v591
    %v593 = vpop.f32.mrf.mxu0
    %594 = vdwg.mxu0
    %v596 = vsel %vm83, %v66, 0
    %598 = vmatprep.subr.mxu0 0.0
    %599 = vmatpush1.msra.mxu0 0.0
    %600 = vmatprep.subr.mxu0 0.0
    %601 = vmatpush1.msra.mxu0 0.0
    %602 = vmatprep.subr.mxu0 0.0
    %603 = vmatpush1.msra.mxu0 0.0
    %604 = vmatprep.subr.mxu0 0.0
    %605 = vmatpush1.msra.mxu0 0.0
    %606 = vmatprep.subr.mxu0 0.0
    %607 = vmatpush1.msra.mxu0 0.0
    %608 = vmatprep.subr.mxu0 0.0
    %609 = vmatpush1.msra.mxu0 0.0
    %610 = vmatprep.subr.mxu0 0.0
    %611 = vmatpush1.msra.mxu0 0.0
    %612 = vmatprep.subr.mxu0 0.0
    %613 = vmatpush1.msra.mxu0 0.0
    %614 = vmatprep.subr.mxu0 0.0
    %615 = vmatpush1.msra.mxu0 0.0
    %616 = vmatprep.subr.mxu0 0.0
    %617 = vmatpush1.msra.mxu0 0.0
    %618 = vmatprep.subr.mxu0 0.0
    %619 = vmatpush1.msra.mxu0 0.0
    %620 = vmatprep.subr.mxu0 0.0
    %621 = vmatpush1.msra.mxu0 0.0
    %622 = vmatprep.subr.mxu0 0.0
    %623 = vmatpush1.msra.mxu0 0.0
    %624 = vmatprep.subr.mxu0 0.0
    %625 = vmatpush1.msra.mxu0 0.0
    %626 = vmatprep.subr.mxu0 0.0
    %627 = vmatpush1.msra.mxu0 0.0
    %628 = vmatprep.subr.mxu0 0.0
    %629 = vmatpush1.msra.mxu0 %v74
    %630 = vmatprep.subr.mxu0 0.0
    %631 = vmatpush2.msra.mxu0 0.0
    %632 = vmatprep.subr.mxu0 0.0
    %633 = vmatpush2.msra.mxu0 0.0
    %634 = vmatprep.subr.mxu0 0.0
    %635 = vmatpush2.msra.mxu0 0.0
    %636 = vmatprep.subr.mxu0 0.0
    %637 = vmatpush2.msra.mxu0 0.0
    %638 = vmatprep.subr.mxu0 0.0
    %639 = vmatpush2.msra.mxu0 0.0
    %640 = vmatprep.subr.mxu0 0.0
    %641 = vmatpush2.msra.mxu0 0.0
    %642 = vmatprep.subr.mxu0 0.0
    %643 = vmatpush2.msra.mxu0 0.0
    %644 = vmatprep.subr.mxu0 0.0
    %645 = vmatpush2.msra.mxu0 0.0
    %646 = vmatprep.subr.mxu0 0.0
    %647 = vmatpush2.msra.mxu0 0.0
    %648 = vmatprep.subr.mxu0 0.0
    %649 = vmatpush2.msra.mxu0 0.0
    %650 = vmatprep.subr.mxu0 0.0
    %651 = vmatpush2.msra.mxu0 0.0
    %652 = vmatprep.subr.mxu0 0.0
    %653 = vmatpush2.msra.mxu0 0.0
    %654 = vmatprep.subr.mxu0 0.0
    %655 = vmatpush2.msra.mxu0 0.0
    %656 = vmatprep.subr.mxu0 0.0
    %657 = vmatpush2.msra.mxu0 0.0
    %658 = vmatprep.subr.mxu0 0.0
    %659 = vmatpush2.msra.mxu0 0.0
    %660 = vmatprep.subr.mxu0 0.0
    %661 = vmatpush2.msra.mxu0 0.0
    %662 = vmatprep.mubr.f32.mxu0 0.0
    %663 = vmatmul.mubr.f32.gmra.mxu0 %v596
    %v664 = vpop.f32.mrf.mxu0
    %v665 = vadd.f32 0.0, %v664
    %v666 = vpop.f32.mrf.mxu0
    %667 = vdwg.mxu0
    %v668 = vmul.f32 %v154, 0.35355338
    %v669 = vmul.f32 %v227, 0.35355338
    %v670 = vmul.f32 %v300, 0.35355338
    %v671 = vmul.f32 %v373, 0.35355338
    %v672 = vmul.f32 %v446, 0.35355338
    %v673 = vmul.f32 %v519, 0.35355338
    %v674 = vmul.f32 %v592, 0.35355338
    %v675 = vmul.f32 %v665, 0.35355338
    %v676 = vsel %vm83, %v668, -inf
    %677 = vmax.xlane.f32.xlu0 %v676
    %v678 = vpop.xlane.xlu0 %677
    %v679 = vsel %vm83, %v669, -inf
    %680 = vmax.xlane.f32.xlu0 %v679
    %v681 = vpop.xlane.xlu0 %680
    %v682 = vsel %vm83, %v670, -inf
    %683 = vmax.xlane.f32.xlu0 %v682
    %v684 = vpop.xlane.xlu0 %683
    %v685 = vsel %vm83, %v671, -inf
    %686 = vmax.xlane.f32.xlu0 %v685
    %v687 = vpop.xlane.xlu0 %686
    %v688 = vsel %vm83, %v672, -inf
    %689 = vmax.xlane.f32.xlu0 %v688
    %v690 = vpop.xlane.xlu0 %689
    %v691 = vsel %vm83, %v673, -inf
    %692 = vmax.xlane.f32.xlu0 %v691
    %v693 = vpop.xlane.xlu0 %692
    %v694 = vsel %vm83, %v674, -inf
    %695 = vmax.xlane.f32.xlu0 %v694
    %v696 = vpop.xlane.xlu0 %695
    %v697 = vsel %vm83, %v675, -inf
    %698 = vmax.xlane.f32.xlu0 %v697
    %v699 = vpop.xlane.xlu0 %698
    %v700 = vsub.f32 %v668, %v678
    %v701 = vsub.f32 %v669, %v681
    %v702 = vsub.f32 %v670, %v684
    %v703 = vsub.f32 %v671, %v687
    %v704 = vsub.f32 %v672, %v690
    %v705 = vsub.f32 %v673, %v693
    %v706 = vsub.f32 %v674, %v696
    %v707 = vsub.f32 %v675, %v699
    %v708 = vmul.f32 %v700, 1.442695
    %v709 = vpow.pop %v708
    %v710 = vmul.f32 %v701, 1.442695
    %v711 = vpow.pop %v710
    %v712 = vmul.f32 %v702, 1.442695
    %v713 = vpow.pop %v712
    %v714 = vmul.f32 %v703, 1.442695
    %v715 = vpow.pop %v714
    %v716 = vmul.f32 %v704, 1.442695
    %v717 = vpow.pop %v716
    %v718 = vmul.f32 %v705, 1.442695
    %v719 = vpow.pop %v718
    %v720 = vmul.f32 %v706, 1.442695
    %v721 = vpow.pop %v720
    %v722 = vmul.f32 %v707, 1.442695
    %v723 = vpow.pop %v722
    %v724 = vsel %vm83, %v709, 0.0
    %725 = vadd.xlane.f32.xlu0 %v724
    %v726 = vpop.xlane.xlu0 %725
    %v727 = vsel %vm83, %v711, 0.0
    %728 = vadd.xlane.f32.xlu0 %v727
    %v729 = vpop.xlane.xlu0 %728
    %v730 = vsel %vm83, %v713, 0.0
    %731 = vadd.xlane.f32.xlu0 %v730
    %v732 = vpop.xlane.xlu0 %731
    %v733 = vsel %vm83, %v715, 0.0
    %734 = vadd.xlane.f32.xlu0 %v733
    %v735 = vpop.xlane.xlu0 %734
    %v736 = vsel %vm83, %v717, 0.0
    %737 = vadd.xlane.f32.xlu0 %v736
    %v738 = vpop.xlane.xlu0 %737
    %v739 = vsel %vm83, %v719, 0.0
    %740 = vadd.xlane.f32.xlu0 %v739
    %v741 = vpop.xlane.xlu0 %740
    %v742 = vsel %vm83, %v721, 0.0
    %743 = vadd.xlane.f32.xlu0 %v742
    %v744 = vpop.xlane.xlu0 %743
    %v745 = vsel %vm83, %v723, 0.0
    %746 = vadd.xlane.f32.xlu0 %v745
    %v747 = vpop.xlane.xlu0 %746
    %v748 = vrcp.pop %v726
    %v749 = vrcp.pop %v729
    %v750 = vrcp.pop %v732
    %v751 = vrcp.pop %v735
    %v752 = vrcp.pop %v738
    %v753 = vrcp.pop %v741
    %v754 = vrcp.pop %v744
    %v755 = vrcp.pop %v747
    %v756 = vmul.f32 %v709, %v748
    %v757 = vmul.f32 %v711, %v749
    %v758 = vmul.f32 %v713, %v750
    %v759 = vmul.f32 %v715, %v751
    %v760 = vmul.f32 %v717, %v752
    %v761 = vmul.f32 %v719, %v753
    %v762 = vmul.f32 %v721, %v754
    %v763 = vmul.f32 %v723, %v755
    %v765 = vsel %vm83, %v756, 0
    %767 = vmatprep.subr.mxu0 0.0
    %768 = vmatpush1.msra.mxu0 0.0
    %769 = vmatprep.subr.mxu0 0.0
    %770 = vmatpush1.msra.mxu0 0.0
    %771 = vmatprep.subr.mxu0 0.0
    %772 = vmatpush1.msra.mxu0 0.0
    %773 = vmatprep.subr.mxu0 0.0
    %774 = vmatpush1.msra.mxu0 0.0
    %775 = vmatprep.subr.mxu0 0.0
    %776 = vmatpush1.msra.mxu0 0.0
    %777 = vmatprep.subr.mxu0 0.0
    %778 = vmatpush1.msra.mxu0 0.0
    %779 = vmatprep.subr.mxu0 0.0
    %780 = vmatpush1.msra.mxu0 0.0
    %781 = vmatprep.subr.mxu0 0.0
    %782 = vmatpush1.msra.mxu0 0.0
    %783 = vmatprep.subr.mxu0 0.0
    %784 = vmatpush1.msra.mxu0 0.0
    %785 = vmatprep.subr.mxu0 0.0
    %786 = vmatpush1.msra.mxu0 0.0
    %787 = vmatprep.subr.mxu0 0.0
    %788 = vmatpush1.msra.mxu0 0.0
    %789 = vmatprep.subr.mxu0 0.0
    %790 = vmatpush1.msra.mxu0 0.0
    %791 = vmatprep.subr.mxu0 0.0
    %792 = vmatpush1.msra.mxu0 0.0
    %793 = vmatprep.subr.mxu0 0.0
    %794 = vmatpush1.msra.mxu0 0.0
    %795 = vmatprep.subr.mxu0 0.0
    %796 = vmatpush1.msra.mxu0 0.0
    %797 = vmatprep.subr.mxu0 0.0
    %798 = vmatpush1.msra.mxu0 %v75
    %799 = vmatprep.subr.mxu0 0.0
    %800 = vmatpush2.msra.mxu0 0.0
    %801 = vmatprep.subr.mxu0 0.0
    %802 = vmatpush2.msra.mxu0 0.0
    %803 = vmatprep.subr.mxu0 0.0
    %804 = vmatpush2.msra.mxu0 0.0
    %805 = vmatprep.subr.mxu0 0.0
    %806 = vmatpush2.msra.mxu0 0.0
    %807 = vmatprep.subr.mxu0 0.0
    %808 = vmatpush2.msra.mxu0 0.0
    %809 = vmatprep.subr.mxu0 0.0
    %810 = vmatpush2.msra.mxu0 0.0
    %811 = vmatprep.subr.mxu0 0.0
    %812 = vmatpush2.msra.mxu0 0.0
    %813 = vmatprep.subr.mxu0 0.0
    %814 = vmatpush2.msra.mxu0 0.0
    %815 = vmatprep.subr.mxu0 0.0
    %816 = vmatpush2.msra.mxu0 0.0
    %817 = vmatprep.subr.mxu0 0.0
    %818 = vmatpush2.msra.mxu0 0.0
    %819 = vmatprep.subr.mxu0 0.0
    %820 = vmatpush2.msra.mxu0 0.0
    %821 = vmatprep.subr.mxu0 0.0
    %822 = vmatpush2.msra.mxu0 0.0
    %823 = vmatprep.subr.mxu0 0.0
    %824 = vmatpush2.msra.mxu0 0.0
    %825 = vmatprep.subr.mxu0 0.0
    %826 = vmatpush2.msra.mxu0 0.0
    %827 = vmatprep.subr.mxu0 0.0
    %828 = vmatpush2.msra.mxu0 0.0
    %829 = vmatprep.subr.mxu0 0.0
    %830 = vmatpush2.msra.mxu0 0.0
    %831 = vmatprep.mubr.f32.mxu0 0.0
    %832 = vmatmul.mubr.f32.gmra.mxu0 %v765
    %v833 = vpop.f32.mrf.mxu0
    %v834 = vadd.f32 0.0, %v833
    %v835 = vpop.f32.mrf.mxu0
    %836 = vdwg.mxu0
    %v838 = vsel %vm83, %v757, 0
    %840 = vmatprep.subr.mxu0 0.0
    %841 = vmatpush1.msra.mxu0 0.0
    %842 = vmatprep.subr.mxu0 0.0
    %843 = vmatpush1.msra.mxu0 0.0
    %844 = vmatprep.subr.mxu0 0.0
    %845 = vmatpush1.msra.mxu0 0.0
    %846 = vmatprep.subr.mxu0 0.0
    %847 = vmatpush1.msra.mxu0 0.0
    %848 = vmatprep.subr.mxu0 0.0
    %849 = vmatpush1.msra.mxu0 0.0
    %850 = vmatprep.subr.mxu0 0.0
    %851 = vmatpush1.msra.mxu0 0.0
    %852 = vmatprep.subr.mxu0 0.0
    %853 = vmatpush1.msra.mxu0 0.0
    %854 = vmatprep.subr.mxu0 0.0
    %855 = vmatpush1.msra.mxu0 0.0
    %856 = vmatprep.subr.mxu0 0.0
    %857 = vmatpush1.msra.mxu0 0.0
    %858 = vmatprep.subr.mxu0 0.0
    %859 = vmatpush1.msra.mxu0 0.0
    %860 = vmatprep.subr.mxu0 0.0
    %861 = vmatpush1.msra.mxu0 0.0
    %862 = vmatprep.subr.mxu0 0.0
    %863 = vmatpush1.msra.mxu0 0.0
    %864 = vmatprep.subr.mxu0 0.0
    %865 = vmatpush1.msra.mxu0 0.0
    %866 = vmatprep.subr.mxu0 0.0
    %867 = vmatpush1.msra.mxu0 0.0
    %868 = vmatprep.subr.mxu0 0.0
    %869 = vmatpush1.msra.mxu0 0.0
    %870 = vmatprep.subr.mxu0 0.0
    %871 = vmatpush1.msra.mxu0 %v76
    %872 = vmatprep.subr.mxu0 0.0
    %873 = vmatpush2.msra.mxu0 0.0
    %874 = vmatprep.subr.mxu0 0.0
    %875 = vmatpush2.msra.mxu0 0.0
    %876 = vmatprep.subr.mxu0 0.0
    %877 = vmatpush2.msra.mxu0 0.0
    %878 = vmatprep.subr.mxu0 0.0
    %879 = vmatpush2.msra.mxu0 0.0
    %880 = vmatprep.subr.mxu0 0.0
    %881 = vmatpush2.msra.mxu0 0.0
    %882 = vmatprep.subr.mxu0 0.0
    %883 = vmatpush2.msra.mxu0 0.0
    %884 = vmatprep.subr.mxu0 0.0
    %885 = vmatpush2.msra.mxu0 0.0
    %886 = vmatprep.subr.mxu0 0.0
    %887 = vmatpush2.msra.mxu0 0.0
    %888 = vmatprep.subr.mxu0 0.0
    %889 = vmatpush2.msra.mxu0 0.0
    %890 = vmatprep.subr.mxu0 0.0
    %891 = vmatpush2.msra.mxu0 0.0
    %892 = vmatprep.subr.mxu0 0.0
    %893 = vmatpush2.msra.mxu0 0.0
    %894 = vmatprep.subr.mxu0 0.0
    %895 = vmatpush2.msra.mxu0 0.0
    %896 = vmatprep.subr.mxu0 0.0
    %897 = vmatpush2.msra.mxu0 0.0
    %898 = vmatprep.subr.mxu0 0.0
    %899 = vmatpush2.msra.mxu0 0.0
    %900 = vmatprep.subr.mxu0 0.0
    %901 = vmatpush2.msra.mxu0 0.0
    %902 = vmatprep.subr.mxu0 0.0
    %903 = vmatpush2.msra.mxu0 0.0
    %904 = vmatprep.mubr.f32.mxu0 0.0
    %905 = vmatmul.mubr.f32.gmra.mxu0 %v838
    %v906 = vpop.f32.mrf.mxu0
    %v907 = vadd.f32 0.0, %v906
    %v908 = vpop.f32.mrf.mxu0
    %909 = vdwg.mxu0
    %v911 = vsel %vm83, %v758, 0
    %913 = vmatprep.subr.mxu0 0.0
    %914 = vmatpush1.msra.mxu0 0.0
    %915 = vmatprep.subr.mxu0 0.0
    %916 = vmatpush1.msra.mxu0 0.0
    %917 = vmatprep.subr.mxu0 0.0
    %918 = vmatpush1.msra.mxu0 0.0
    %919 = vmatprep.subr.mxu0 0.0
    %920 = vmatpush1.msra.mxu0 0.0
    %921 = vmatprep.subr.mxu0 0.0
    %922 = vmatpush1.msra.mxu0 0.0
    %923 = vmatprep.subr.mxu0 0.0
    %924 = vmatpush1.msra.mxu0 0.0
    %925 = vmatprep.subr.mxu0 0.0
    %926 = vmatpush1.msra.mxu0 0.0
    %927 = vmatprep.subr.mxu0 0.0
    %928 = vmatpush1.msra.mxu0 0.0
    %929 = vmatprep.subr.mxu0 0.0
    %930 = vmatpush1.msra.mxu0 0.0
    %931 = vmatprep.subr.mxu0 0.0
    %932 = vmatpush1.msra.mxu0 0.0
    %933 = vmatprep.subr.mxu0 0.0
    %934 = vmatpush1.msra.mxu0 0.0
    %935 = vmatprep.subr.mxu0 0.0
    %936 = vmatpush1.msra.mxu0 0.0
    %937 = vmatprep.subr.mxu0 0.0
    %938 = vmatpush1.msra.mxu0 0.0
    %939 = vmatprep.subr.mxu0 0.0
    %940 = vmatpush1.msra.mxu0 0.0
    %941 = vmatprep.subr.mxu0 0.0
    %942 = vmatpush1.msra.mxu0 0.0
    %943 = vmatprep.subr.mxu0 0.0
    %944 = vmatpush1.msra.mxu0 %v77
    %945 = vmatprep.subr.mxu0 0.0
    %946 = vmatpush2.msra.mxu0 0.0
    %947 = vmatprep.subr.mxu0 0.0
    %948 = vmatpush2.msra.mxu0 0.0
    %949 = vmatprep.subr.mxu0 0.0
    %950 = vmatpush2.msra.mxu0 0.0
    %951 = vmatprep.subr.mxu0 0.0
    %952 = vmatpush2.msra.mxu0 0.0
    %953 = vmatprep.subr.mxu0 0.0
    %954 = vmatpush2.msra.mxu0 0.0
    %955 = vmatprep.subr.mxu0 0.0
    %956 = vmatpush2.msra.mxu0 0.0
    %957 = vmatprep.subr.mxu0 0.0
    %958 = vmatpush2.msra.mxu0 0.0
    %959 = vmatprep.subr.mxu0 0.0
    %960 = vmatpush2.msra.mxu0 0.0
    %961 = vmatprep.subr.mxu0 0.0
    %962 = vmatpush2.msra.mxu0 0.0
    %963 = vmatprep.subr.mxu0 0.0
    %964 = vmatpush2.msra.mxu0 0.0
    %965 = vmatprep.subr.mxu0 0.0
    %966 = vmatpush2.msra.mxu0 0.0
    %967 = vmatprep.subr.mxu0 0.0
    %968 = vmatpush2.msra.mxu0 0.0
    %969 = vmatprep.subr.mxu0 0.0
    %970 = vmatpush2.msra.mxu0 0.0
    %971 = vmatprep.subr.mxu0 0.0
    %972 = vmatpush2.msra.mxu0 0.0
    %973 = vmatprep.subr.mxu0 0.0
    %974 = vmatpush2.msra.mxu0 0.0
    %975 = vmatprep.subr.mxu0 0.0
    %976 = vmatpush2.msra.mxu0 0.0
    %977 = vmatprep.mubr.f32.mxu0 0.0
    %978 = vmatmul.mubr.f32.gmra.mxu0 %v911
    %v979 = vpop.f32.mrf.mxu0
    %v980 = vadd.f32 0.0, %v979
    %v981 = vpop.f32.mrf.mxu0
    %982 = vdwg.mxu0
    %v984 = vsel %vm83, %v759, 0
    %986 = vmatprep.subr.mxu0 0.0
    %987 = vmatpush1.msra.mxu0 0.0
    %988 = vmatprep.subr.mxu0 0.0
    %989 = vmatpush1.msra.mxu0 0.0
    %990 = vmatprep.subr.mxu0 0.0
    %991 = vmatpush1.msra.mxu0 0.0
    %992 = vmatprep.subr.mxu0 0.0
    %993 = vmatpush1.msra.mxu0 0.0
    %994 = vmatprep.subr.mxu0 0.0
    %995 = vmatpush1.msra.mxu0 0.0
    %996 = vmatprep.subr.mxu0 0.0
    %997 = vmatpush1.msra.mxu0 0.0
    %998 = vmatprep.subr.mxu0 0.0
    %999 = vmatpush1.msra.mxu0 0.0
    %1000 = vmatprep.subr.mxu0 0.0
    %1001 = vmatpush1.msra.mxu0 0.0
    %1002 = vmatprep.subr.mxu0 0.0
    %1003 = vmatpush1.msra.mxu0 0.0
    %1004 = vmatprep.subr.mxu0 0.0
    %1005 = vmatpush1.msra.mxu0 0.0
    %1006 = vmatprep.subr.mxu0 0.0
    %1007 = vmatpush1.msra.mxu0 0.0
    %1008 = vmatprep.subr.mxu0 0.0
    %1009 = vmatpush1.msra.mxu0 0.0
    %1010 = vmatprep.subr.mxu0 0.0
    %1011 = vmatpush1.msra.mxu0 0.0
    %1012 = vmatprep.subr.mxu0 0.0
    %1013 = vmatpush1.msra.mxu0 0.0
    %1014 = vmatprep.subr.mxu0 0.0
    %1015 = vmatpush1.msra.mxu0 0.0
    %1016 = vmatprep.subr.mxu0 0.0
    %1017 = vmatpush1.msra.mxu0 %v78
    %1018 = vmatprep.subr.mxu0 0.0
    %1019 = vmatpush2.msra.mxu0 0.0
    %1020 = vmatprep.subr.mxu0 0.0
    %1021 = vmatpush2.msra.mxu0 0.0
    %1022 = vmatprep.subr.mxu0 0.0
    %1023 = vmatpush2.msra.mxu0 0.0
    %1024 = vmatprep.subr.mxu0 0.0
    %1025 = vmatpush2.msra.mxu0 0.0
    %1026 = vmatprep.subr.mxu0 0.0
    %1027 = vmatpush2.msra.mxu0 0.0
    %1028 = vmatprep.subr.mxu0 0.0
    %1029 = vmatpush2.msra.mxu0 0.0
    %1030 = vmatprep.subr.mxu0 0.0
    %1031 = vmatpush2.msra.mxu0 0.0
    %1032 = vmatprep.subr.mxu0 0.0
    %1033 = vmatpush2.msra.mxu0 0.0
    %1034 = vmatprep.subr.mxu0 0.0
    %1035 = vmatpush2.msra.mxu0 0.0
    %1036 = vmatprep.subr.mxu0 0.0
    %1037 = vmatpush2.msra.mxu0 0.0
    %1038 = vmatprep.subr.mxu0 0.0
    %1039 = vmatpush2.msra.mxu0 0.0
    %1040 = vmatprep.subr.mxu0 0.0
    %1041 = vmatpush2.msra.mxu0 0.0
    %1042 = vmatprep.subr.mxu0 0.0
    %1043 = vmatpush2.msra.mxu0 0.0
    %1044 = vmatprep.subr.mxu0 0.0
    %1045 = vmatpush2.msra.mxu0 0.0
    %1046 = vmatprep.subr.mxu0 0.0
    %1047 = vmatpush2.msra.mxu0 0.0
    %1048 = vmatprep.subr.mxu0 0.0
    %1049 = vmatpush2.msra.mxu0 0.0
    %1050 = vmatprep.mubr.f32.mxu0 0.0
    %1051 = vmatmul.mubr.f32.gmra.mxu0 %v984
    %v1052 = vpop.f32.mrf.mxu0
    %v1053 = vadd.f32 0.0, %v1052
    %v1054 = vpop.f32.mrf.mxu0
    %1055 = vdwg.mxu0
    %v1057 = vsel %vm83, %v760, 0
    %1059 = vmatprep.subr.mxu0 0.0
    %1060 = vmatpush1.msra.mxu0 0.0
    %1061 = vmatprep.subr.mxu0 0.0
    %1062 = vmatpush1.msra.mxu0 0.0
    %1063 = vmatprep.subr.mxu0 0.0
    %1064 = vmatpush1.msra.mxu0 0.0
    %1065 = vmatprep.subr.mxu0 0.0
    %1066 = vmatpush1.msra.mxu0 0.0
    %1067 = vmatprep.subr.mxu0 0.0
    %1068 = vmatpush1.msra.mxu0 0.0
    %1069 = vmatprep.subr.mxu0 0.0
    %1070 = vmatpush1.msra.mxu0 0.0
    %1071 = vmatprep.subr.mxu0 0.0
    %1072 = vmatpush1.msra.mxu0 0.0
    %1073 = vmatprep.subr.mxu0 0.0
    %1074 = vmatpush1.msra.mxu0 0.0
    %1075 = vmatprep.subr.mxu0 0.0
    %1076 = vmatpush1.msra.mxu0 0.0
    %1077 = vmatprep.subr.mxu0 0.0
    %1078 = vmatpush1.msra.mxu0 0.0
    %1079 = vmatprep.subr.mxu0 0.0
    %1080 = vmatpush1.msra.mxu0 0.0
    %1081 = vmatprep.subr.mxu0 0.0
    %1082 = vmatpush1.msra.mxu0 0.0
    %1083 = vmatprep.subr.mxu0 0.0
    %1084 = vmatpush1.msra.mxu0 0.0
    %1085 = vmatprep.subr.mxu0 0.0
    %1086 = vmatpush1.msra.mxu0 0.0
    %1087 = vmatprep.subr.mxu0 0.0
    %1088 = vmatpush1.msra.mxu0 0.0
    %1089 = vmatprep.subr.mxu0 0.0
    %1090 = vmatpush1.msra.mxu0 %v79
    %1091 = vmatprep.subr.mxu0 0.0
    %1092 = vmatpush2.msra.mxu0 0.0
    %1093 = vmatprep.subr.mxu0 0.0
    %1094 = vmatpush2.msra.mxu0 0.0
    %1095 = vmatprep.subr.mxu0 0.0
    %1096 = vmatpush2.msra.mxu0 0.0
    %1097 = vmatprep.subr.mxu0 0.0
    %1098 = vmatpush2.msra.mxu0 0.0
    %1099 = vmatprep.subr.mxu0 0.0
    %1100 = vmatpush2.msra.mxu0 0.0
    %1101 = vmatprep.subr.mxu0 0.0
    %1102 = vmatpush2.msra.mxu0 0.0
    %1103 = vmatprep.subr.mxu0 0.0
    %1104 = vmatpush2.msra.mxu0 0.0
    %1105 = vmatprep.subr.mxu0 0.0
    %1106 = vmatpush2.msra.mxu0 0.0
    %1107 = vmatprep.subr.mxu0 0.0
    %1108 = vmatpush2.msra.mxu0 0.0
    %1109 = vmatprep.subr.mxu0 0.0
    %1110 = vmatpush2.msra.mxu0 0.0
    %1111 = vmatprep.subr.mxu0 0.0
    %1112 = vmatpush2.msra.mxu0 0.0
    %1113 = vmatprep.subr.mxu0 0.0
    %1114 = vmatpush2.msra.mxu0 0.0
    %1115 = vmatprep.subr.mxu0 0.0
    %1116 = vmatpush2.msra.mxu0 0.0
    %1117 = vmatprep.subr.mxu0 0.0
    %1118 = vmatpush2.msra.mxu0 0.0
    %1119 = vmatprep.subr.mxu0 0.0
    %1120 = vmatpush2.msra.mxu0 0.0
    %1121 = vmatprep.subr.mxu0 0.0
    %1122 = vmatpush2.msra.mxu0 0.0
    %1123 = vmatprep.mubr.f32.mxu0 0.0
    %1124 = vmatmul.mubr.f32.gmra.mxu0 %v1057
    %v1125 = vpop.f32.mrf.mxu0
    %v1126 = vadd.f32 0.0, %v1125
    %v1127 = vpop.f32.mrf.mxu0
    %1128 = vdwg.mxu0
    %v1130 = vsel %vm83, %v761, 0
    %1132 = vmatprep.subr.mxu0 0.0
    %1133 = vmatpush1.msra.mxu0 0.0
    %1134 = vmatprep.subr.mxu0 0.0
    %1135 = vmatpush1.msra.mxu0 0.0
    %1136 = vmatprep.subr.mxu0 0.0
    %1137 = vmatpush1.msra.mxu0 0.0
    %1138 = vmatprep.subr.mxu0 0.0
    %1139 = vmatpush1.msra.mxu0 0.0
    %1140 = vmatprep.subr.mxu0 0.0
    %1141 = vmatpush1.msra.mxu0 0.0
    %1142 = vmatprep.subr.mxu0 0.0
    %1143 = vmatpush1.msra.mxu0 0.0
    %1144 = vmatprep.subr.mxu0 0.0
    %1145 = vmatpush1.msra.mxu0 0.0
    %1146 = vmatprep.subr.mxu0 0.0
    %1147 = vmatpush1.msra.mxu0 0.0
    %1148 = vmatprep.subr.mxu0 0.0
    %1149 = vmatpush1.msra.mxu0 0.0
    %1150 = vmatprep.subr.mxu0 0.0
    %1151 = vmatpush1.msra.mxu0 0.0
    %1152 = vmatprep.subr.mxu0 0.0
    %1153 = vmatpush1.msra.mxu0 0.0
    %1154 = vmatprep.subr.mxu0 0.0
    %1155 = vmatpush1.msra.mxu0 0.0
    %1156 = vmatprep.subr.mxu0 0.0
    %1157 = vmatpush1.msra.mxu0 0.0
    %1158 = vmatprep.subr.mxu0 0.0
    %1159 = vmatpush1.msra.mxu0 0.0
    %1160 = vmatprep.subr.mxu0 0.0
    %1161 = vmatpush1.msra.mxu0 0.0
    %1162 = vmatprep.subr.mxu0 0.0
    %1163 = vmatpush1.msra.mxu0 %v80
    %1164 = vmatprep.subr.mxu0 0.0
    %1165 = vmatpush2.msra.mxu0 0.0
    %1166 = vmatprep.subr.mxu0 0.0
    %1167 = vmatpush2.msra.mxu0 0.0
    %1168 = vmatprep.subr.mxu0 0.0
    %1169 = vmatpush2.msra.mxu0 0.0
    %1170 = vmatprep.subr.mxu0 0.0
    %1171 = vmatpush2.msra.mxu0 0.0
    %1172 = vmatprep.subr.mxu0 0.0
    %1173 = vmatpush2.msra.mxu0 0.0
    %1174 = vmatprep.subr.mxu0 0.0
    %1175 = vmatpush2.msra.mxu0 0.0
    %1176 = vmatprep.subr.mxu0 0.0
    %1177 = vmatpush2.msra.mxu0 0.0
    %1178 = vmatprep.subr.mxu0 0.0
    %1179 = vmatpush2.msra.mxu0 0.0
    %1180 = vmatprep.subr.mxu0 0.0
    %1181 = vmatpush2.msra.mxu0 0.0
    %1182 = vmatprep.subr.mxu0 0.0
    %1183 = vmatpush2.msra.mxu0 0.0
    %1184 = vmatprep.subr.mxu0 0.0
    %1185 = vmatpush2.msra.mxu0 0.0
    %1186 = vmatprep.subr.mxu0 0.0
    %1187 = vmatpush2.msra.mxu0 0.0
    %1188 = vmatprep.subr.mxu0 0.0
    %1189 = vmatpush2.msra.mxu0 0.0
    %1190 = vmatprep.subr.mxu0 0.0
    %1191 = vmatpush2.msra.mxu0 0.0
    %1192 = vmatprep.subr.mxu0 0.0
    %1193 = vmatpush2.msra.mxu0 0.0
    %1194 = vmatprep.subr.mxu0 0.0
    %1195 = vmatpush2.msra.mxu0 0.0
    %1196 = vmatprep.mubr.f32.mxu0 0.0
    %1197 = vmatmul.mubr.f32.gmra.mxu0 %v1130
    %v1198 = vpop.f32.mrf.mxu0
    %v1199 = vadd.f32 0.0, %v1198
    %v1200 = vpop.f32.mrf.mxu0
    %1201 = vdwg.mxu0
    %v1203 = vsel %vm83, %v762, 0
    %1205 = vmatprep.subr.mxu0 0.0
    %1206 = vmatpush1.msra.mxu0 0.0
    %1207 = vmatprep.subr.mxu0 0.0
    %1208 = vmatpush1.msra.mxu0 0.0
    %1209 = vmatprep.subr.mxu0 0.0
    %1210 = vmatpush1.msra.mxu0 0.0
    %1211 = vmatprep.subr.mxu0 0.0
    %1212 = vmatpush1.msra.mxu0 0.0
    %1213 = vmatprep.subr.mxu0 0.0
    %1214 = vmatpush1.msra.mxu0 0.0
    %1215 = vmatprep.subr.mxu0 0.0
    %1216 = vmatpush1.msra.mxu0 0.0
    %1217 = vmatprep.subr.mxu0 0.0
    %1218 = vmatpush1.msra.mxu0 0.0
    %1219 = vmatprep.subr.mxu0 0.0
    %1220 = vmatpush1.msra.mxu0 0.0
    %1221 = vmatprep.subr.mxu0 0.0
    %1222 = vmatpush1.msra.mxu0 0.0
    %1223 = vmatprep.subr.mxu0 0.0
    %1224 = vmatpush1.msra.mxu0 0.0
    %1225 = vmatprep.subr.mxu0 0.0
    %1226 = vmatpush1.msra.mxu0 0.0
    %1227 = vmatprep.subr.mxu0 0.0
    %1228 = vmatpush1.msra.mxu0 0.0
    %1229 = vmatprep.subr.mxu0 0.0
    %1230 = vmatpush1.msra.mxu0 0.0
    %1231 = vmatprep.subr.mxu0 0.0
    %1232 = vmatpush1.msra.mxu0 0.0
    %1233 = vmatprep.subr.mxu0 0.0
    %1234 = vmatpush1.msra.mxu0 0.0
    %1235 = vmatprep.subr.mxu0 0.0
    %1236 = vmatpush1.msra.mxu0 %v81
    %1237 = vmatprep.subr.mxu0 0.0
    %1238 = vmatpush2.msra.mxu0 0.0
    %1239 = vmatprep.subr.mxu0 0.0
    %1240 = vmatpush2.msra.mxu0 0.0
    %1241 = vmatprep.subr.mxu0 0.0
    %1242 = vmatpush2.msra.mxu0 0.0
    %1243 = vmatprep.subr.mxu0 0.0
    %1244 = vmatpush2.msra.mxu0 0.0
    %1245 = vmatprep.subr.mxu0 0.0
    %1246 = vmatpush2.msra.mxu0 0.0
    %1247 = vmatprep.subr.mxu0 0.0
    %1248 = vmatpush2.msra.mxu0 0.0
    %1249 = vmatprep.subr.mxu0 0.0
    %1250 = vmatpush2.msra.mxu0 0.0
    %1251 = vmatprep.subr.mxu0 0.0
    %1252 = vmatpush2.msra.mxu0 0.0
    %1253 = vmatprep.subr.mxu0 0.0
    %1254 = vmatpush2.msra.mxu0 0.0
    %1255 = vmatprep.subr.mxu0 0.0
    %1256 = vmatpush2.msra.mxu0 0.0
    %1257 = vmatprep.subr.mxu0 0.0
    %1258 = vmatpush2.msra.mxu0 0.0
    %1259 = vmatprep.subr.mxu0 0.0
    %1260 = vmatpush2.msra.mxu0 0.0
    %1261 = vmatprep.subr.mxu0 0.0
    %1262 = vmatpush2.msra.mxu0 0.0
    %1263 = vmatprep.subr.mxu0 0.0
    %1264 = vmatpush2.msra.mxu0 0.0
    %1265 = vmatprep.subr.mxu0 0.0
    %1266 = vmatpush2.msra.mxu0 0.0
    %1267 = vmatprep.subr.mxu0 0.0
    %1268 = vmatpush2.msra.mxu0 0.0
    %1269 = vmatprep.mubr.f32.mxu0 0.0
    %1270 = vmatmul.mubr.f32.gmra.mxu0 %v1203
    %v1271 = vpop.f32.mrf.mxu0
    %v1272 = vadd.f32 0.0, %v1271
    %v1273 = vpop.f32.mrf.mxu0
    %1274 = vdwg.mxu0
    %v1276 = vsel %vm83, %v763, 0
    %1278 = vmatprep.subr.mxu0 0.0
    %1279 = vmatpush1.msra.mxu0 0.0
    %1280 = vmatprep.subr.mxu0 0.0
    %1281 = vmatpush1.msra.mxu0 0.0
    %1282 = vmatprep.subr.mxu0 0.0
    %1283 = vmatpush1.msra.mxu0 0.0
    %1284 = vmatprep.subr.mxu0 0.0
    %1285 = vmatpush1.msra.mxu0 0.0
    %1286 = vmatprep.subr.mxu0 0.0
    %1287 = vmatpush1.msra.mxu0 0.0
    %1288 = vmatprep.subr.mxu0 0.0
    %1289 = vmatpush1.msra.mxu0 0.0
    %1290 = vmatprep.subr.mxu0 0.0
    %1291 = vmatpush1.msra.mxu0 0.0
    %1292 = vmatprep.subr.mxu0 0.0
    %1293 = vmatpush1.msra.mxu0 0.0
    %1294 = vmatprep.subr.mxu0 0.0
    %1295 = vmatpush1.msra.mxu0 0.0
    %1296 = vmatprep.subr.mxu0 0.0
    %1297 = vmatpush1.msra.mxu0 0.0
    %1298 = vmatprep.subr.mxu0 0.0
    %1299 = vmatpush1.msra.mxu0 0.0
    %1300 = vmatprep.subr.mxu0 0.0
    %1301 = vmatpush1.msra.mxu0 0.0
    %1302 = vmatprep.subr.mxu0 0.0
    %1303 = vmatpush1.msra.mxu0 0.0
    %1304 = vmatprep.subr.mxu0 0.0
    %1305 = vmatpush1.msra.mxu0 0.0
    %1306 = vmatprep.subr.mxu0 0.0
    %1307 = vmatpush1.msra.mxu0 0.0
    %1308 = vmatprep.subr.mxu0 0.0
    %1309 = vmatpush1.msra.mxu0 %v82
    %1310 = vmatprep.subr.mxu0 0.0
    %1311 = vmatpush2.msra.mxu0 0.0
    %1312 = vmatprep.subr.mxu0 0.0
    %1313 = vmatpush2.msra.mxu0 0.0
    %1314 = vmatprep.subr.mxu0 0.0
    %1315 = vmatpush2.msra.mxu0 0.0
    %1316 = vmatprep.subr.mxu0 0.0
    %1317 = vmatpush2.msra.mxu0 0.0
    %1318 = vmatprep.subr.mxu0 0.0
    %1319 = vmatpush2.msra.mxu0 0.0
    %1320 = vmatprep.subr.mxu0 0.0
    %1321 = vmatpush2.msra.mxu0 0.0
    %1322 = vmatprep.subr.mxu0 0.0
    %1323 = vmatpush2.msra.mxu0 0.0
    %1324 = vmatprep.subr.mxu0 0.0
    %1325 = vmatpush2.msra.mxu0 0.0
    %1326 = vmatprep.subr.mxu0 0.0
    %1327 = vmatpush2.msra.mxu0 0.0
    %1328 = vmatprep.subr.mxu0 0.0
    %1329 = vmatpush2.msra.mxu0 0.0
    %1330 = vmatprep.subr.mxu0 0.0
    %1331 = vmatpush2.msra.mxu0 0.0
    %1332 = vmatprep.subr.mxu0 0.0
    %1333 = vmatpush2.msra.mxu0 0.0
    %1334 = vmatprep.subr.mxu0 0.0
    %1335 = vmatpush2.msra.mxu0 0.0
    %1336 = vmatprep.subr.mxu0 0.0
    %1337 = vmatpush2.msra.mxu0 0.0
    %1338 = vmatprep.subr.mxu0 0.0
    %1339 = vmatpush2.msra.mxu0 0.0
    %1340 = vmatprep.subr.mxu0 0.0
    %1341 = vmatpush2.msra.mxu0 0.0
    %1342 = vmatprep.mubr.f32.mxu0 0.0
    %1343 = vmatmul.mubr.f32.gmra.mxu0 %v1276
    %v1344 = vpop.f32.mrf.mxu0
    %v1345 = vadd.f32 0.0, %v1344
    %v1346 = vpop.f32.mrf.mxu0
    %1347 = vdwg.mxu0
    %1348 = vst.msk [vmem:[#allocation9] sm:$0xff] %vm83, %v756
    %1349 = vst.msk [vmem:[#allocation9 + $0x8] sm:$0xff] %vm83, %v757
    %1350 = vst.msk [vmem:[#allocation9 + $0x10] sm:$0xff] %vm83, %v758
    %1351 = vst.msk [vmem:[#allocation9 + $0x18] sm:$0xff] %vm83, %v759
    %1352 = vst.msk [vmem:[#allocation9 + $0x20] sm:$0xff] %vm83, %v760
    %1353 = vst.msk [vmem:[#allocation9 + $0x28] sm:$0xff] %vm83, %v761
    %1354 = vst.msk [vmem:[#allocation9 + $0x30] sm:$0xff] %vm83, %v762
    %1355 = vst.msk [vmem:[#allocation9 + $0x38] sm:$0xff] %vm83, %v763
    %1356 = vst.msk [vmem:[#allocation8] sm:$0xff] %vm83, %v834
    %1357 = vst.msk [vmem:[#allocation8 + $0x8] sm:$0xff] %vm83, %v907
    %1358 = vst.msk [vmem:[#allocation8 + $0x10] sm:$0xff] %vm83, %v980
    %1359 = vst.msk [vmem:[#allocation8 + $0x18] sm:$0xff] %vm83, %v1053
    %1360 = vst.msk [vmem:[#allocation8 + $0x20] sm:$0xff] %vm83, %v1126
    %1361 = vst.msk [vmem:[#allocation8 + $0x28] sm:$0xff] %vm83, %v1199
    %1362 = vst.msk [vmem:[#allocation8 + $0x30] sm:$0xff] %vm83, %v1272
    %1363 = vst.msk [vmem:[#allocation8 + $0x38] sm:$0xff] %vm83, %v1345
    // Predicated region
    $region26: #{tpu_custom_call.1} parent=1 // pred_check
      _
    $region27: #{tpu_custom_call.1} parent=1 // pred_check_branch
      %1365 = sbr.rel (0) target = $region29
    $region28: #{tpu_custom_call.1} parent=1 // pred_region
      %s1367 = ssub.s32 1024, 1024
      %1368 = vsyncadd [#allocation4], %s1367
      %s1369 = sshll.u32 [#allocation8], 4
      %s1370 = int_to_ptr.vmem [resolvable:$true] %s1369
      %1375 = dma.vmem_to_hbm [thread:$0]  %s1370, 1024, %s3, [#allocation4], 128, 128, 8
    $region29: #{tpu_custom_call.1} parent=1 // pred_fallthru
      _
    // Predicated region
    $region30: #{tpu_custom_call.1} parent=1 // pred_check
      _
    $region31: #{tpu_custom_call.1} parent=1 // pred_check_branch
      %1377 = sbr.rel (0) target = $region33
    $region32: #{tpu_custom_call.1} parent=1 // pred_region
      %s1379 = ssub.s32 1024, 1024
      %1380 = vsyncadd [#allocation10], %s1379
      %s1381 = sshll.u32 [#allocation9], 4
      %s1382 = int_to_ptr.vmem [resolvable:$true] %s1381
      %1387 = dma.vmem_to_hbm [thread:$0]  %s1382, 1024, %s4, [#allocation10], 128, 128, 8
    $region33: #{tpu_custom_call.1} parent=1 // pred_fallthru
      _
    // Predicated region
    $region34: #{tpu_custom_call.1} parent=1 // pred_check
      _
    $region35: #{tpu_custom_call.1} parent=1 // pred_check_branch
      %1389 = sbr.rel (0) target = $region37
    $region36: #{tpu_custom_call.1} parent=1 // pred_region
      %1390 = dma.done [#allocation4], 1024
    $region37: #{tpu_custom_call.1} parent=1 // pred_fallthru
      _
    // Predicated region
    $region38: #{tpu_custom_call.1} parent=1 // pred_check
      _
    $region39: #{tpu_custom_call.1} parent=1 // pred_check_branch
      %1392 = sbr.rel (0) target = $region41
    $region40: #{tpu_custom_call.1} parent=1 // pred_region
      %1393 = dma.done [#allocation10], 1024
    $region41: #{tpu_custom_call.1} parent=1 // pred_fallthru
      _
    %1394 = vsyncpa [#allocation3], 1
    %1395 = vsyncpa [#allocation6], 1
    %1396 = vsyncpa [#allocation4], 1
    %1397 = vsyncpa [#allocation10], 1

</llo_original>
